<compile_context>
chip_gen: v5e
topology: v5e:2x2
jax: 0.10.0
libtpu: 0.0.40
codegen_flags: <defaults>
</compile_context>

<pallas_src>
import functools

import jax
import jax.numpy as jnp
from jax.experimental import pallas as pl
from jax.experimental.pallas import tpu as pltpu


# ----------------------------- Pallas kernels ------------------------------


def _gemm_stats_kernel(a_ref, w_ref, y_ref, sum_ref, sq_ref):
    """Lane-dense conv GEMM tile + per-tile partial BN statistics.

    a_ref:   (1, K_pad, T)        bf16  im2col patches (transposed), one image
    w_ref:   (C_out_pad, K_pad)   bf16  conv weight
    y_ref:   (1, C_out_pad, T)    bf16  conv output tile (lane-dense in T)
    sum_ref: (1, 1, C_out_pad, 1) f32   partial sum over this tile's lanes
    sq_ref:  (1, 1, C_out_pad, 1) f32   partial sum of squares
    """
    a = a_ref[0]                                                  # (K_pad, T)
    y = jnp.dot(w_ref[...], a, preferred_element_type=jnp.float32)
    # Statistics come from the f32 accumulator (before any down-cast), so the
    # BN mean/var are unaffected by storing y in bf16.  Zero-padded lanes /
    # K rows / channels contribute exactly 0; the true element count is
    # divided out in the JAX epilogue.  Lane-axis reductions run on the XLU
    # while the MXU is busy with the next tile.
    sum_ref[...] = jnp.sum(y, axis=1, keepdims=True)[None, None]
    sq_ref[...] = jnp.sum(y * y, axis=1, keepdims=True)[None, None]
    y_ref[...] = y[None].astype(y_ref.dtype)


def _bn_act_kernel(y_ref, scale_ref, shift_ref, o_ref, *, act):
    """Fused BatchNorm affine + activation (lane-dense elementwise pass).

    y_ref:     (1, C_out_pad, T) bf16 (or f32)
    scale_ref: (C_out_pad, 1)    f32   gamma / sqrt(var + eps)
    shift_ref: (C_out_pad, 1)    f32   beta - mean * scale
    o_ref:     (1, C_out_pad, T) output dtype
    """
    y = y_ref[0].astype(jnp.float32)
    z = y * scale_ref[...] + shift_ref[...]          # lane-broadcast per channel
    if act is None:
        out = z                                      # nn.Identity()
    elif act in ("silu", "swish"):
        out = z * jax.nn.sigmoid(z)                  # nn.SiLU / Swish (EUP)
    elif act == "relu":
        out = jnp.maximum(z, 0.0)
    elif act == "lrelu":
        out = jnp.where(z >= 0, z, 0.1 * z)          # nn.LeakyReLU(0.1)
    elif act == "hardsigmoid":
        out = jnp.clip(z / 6.0 + 0.5, 0.0, 1.0)
    else:
        raise AttributeError("Unsupported act type: {}".format(act))
    o_ref[...] = out[None].astype(o_ref.dtype)


# ------------------------------- JAX glue ----------------------------------


def _round_up(x, m):
    return (x + m - 1) // m * m


def _vmem_limit_bytes():
    try:
        cap = int(pltpu.get_tpu_info().vmem_capacity_bytes)
    except Exception:
        cap = 64 * 1024 * 1024          # conservative fallback (v7x per-TC VMEM)
    return min(cap * 3 // 4, 96 * 1024 * 1024)


def _pick_tile(hw, bytes_fn, budget, max_tile):
    """Largest multiple of 128 (<= max_tile, ~hw) whose VMEM footprint fits."""
    cap = max(128, min(max_tile, _round_up(hw, 128)))
    for cand in range(cap, 127, -128):
        if bytes_fn(cand) <= budget:
            return cand
    return 128


def _im2col_t(x, kh, kw, stride, padding):
    """x (N,C,H,W) -> transposed patches (N, K, Ho*Wo), K ordered (kh,kw,c)."""
    n, c, h, w = x.shape
    xp = jnp.pad(x, ((0, 0), (0, 0), (padding, padding), (padding, padding)))
    h_out = (h + 2 * padding - kh) // stride + 1
    w_out = (w + 2 * padding - kw) // stride + 1
    cols = []
    for i in range(kh):
        for j in range(kw):
            cols.append(
                xp[:, :, i:i + stride * h_out:stride, j:j + stride * w_out:stride]
            )                                     # (n, c, h_out, w_out)
    p = jnp.stack(cols, axis=1)                   # (n, kh*kw, c, h_out, w_out)
    return p.reshape(n, kh * kw * c, h_out * w_out), h_out, w_out


def conv_bn_layer(x, weight, gamma, beta, *, stride=1, padding=0, groups=1,
                  act=None, eps=1e-5, interm_dtype=jnp.bfloat16):
    """Conv2d(bias=False) -> BatchNorm2d (training-mode batch stats) -> act."""
    if groups != 1:
        # TODO(synk): grouped convolution not implemented in the Pallas GEMM path.
        raise NotImplementedError("groups != 1 not supported")
    if act not in (None, "silu", "swish", "relu", "lrelu", "hardsigmoid"):
        raise AttributeError("Unsupported act type: {}".format(act))

    n, c_in, _, _ = x.shape
    c_out, c_in_w, kh, kw = weight.shape
    assert c_in_w == c_in
    out_dtype = x.dtype

    # --- host-side (XLA) im2col in bf16 + padding to TPU-friendly shapes ----
    patches_t, h_out, w_out = _im2col_t(x.astype(jnp.bfloat16), kh, kw,
                                        stride, padding)
    hw = h_out * w_out
    k = c_in * kh * kw
    k_pad = _round_up(k, 16)                 # bf16 sublane packing
    c_out_pad = _round_up(c_out, 16)         # bf16 sublane packing for y / W2

    interm_bytes = jnp.dtype(interm_dtype).itemsize
    out_bytes = jnp.dtype(out_dtype).itemsize
    vmem_limit = _vmem_limit_bytes()
    budget = vmem_limit // 2                 # headroom for double-buffering etc.

    def p1_bytes(t):                         # per-step VMEM estimate (pass 1)
        return (2 * k_pad * t * 2                      # patches (bf16, 2 bufs)
                + 2 * c_out_pad * k_pad * 2            # weights (bf16)
                + 2 * c_out_pad * t * interm_bytes     # y tile (2 bufs)
                + 4 * c_out_pad * t                    # f32 MXU accumulator
                + 4096)

    t1 = _pick_tile(hw, p1_bytes, budget, max_tile=4096)
    hw_pad = _round_up(hw, t1)
    g1 = hw_pad // t1

    patches_t = jnp.pad(patches_t, ((0, 0), (0, k_pad - k), (0, hw_pad - hw)))
    # (C_out_pad, K_pad) bf16 with K ordered (kh, kw, c_in) to match im2col.
    w2 = weight.astype(jnp.bfloat16).transpose(0, 2, 3, 1).reshape(c_out, k)
    w2 = jnp.pad(w2, ((0, c_out_pad - c_out), (0, k_pad - k)))

    # --- pass 1: conv GEMM + per-tile partial BN statistics -----------------
    y, psum, psq = pl.pallas_call(
        _gemm_stats_kernel,
        out_shape=(
            jax.ShapeDtypeStruct((n, c_out_pad, hw_pad), interm_dtype),
            jax.ShapeDtypeStruct((n, g1, c_out_pad, 1), jnp.float32),
            jax.ShapeDtypeStruct((n, g1, c_out_pad, 1), jnp.float32),
        ),
        grid_spec=pltpu.PrefetchScalarGridSpec(
            num_scalar_prefetch=0,
            grid=(n, g1),
            in_specs=[
                pl.BlockSpec((1, k_pad, t1), lambda b, t: (b, 0, t)),
                pl.BlockSpec((c_out_pad, k_pad), lambda b, t: (0, 0)),
            ],
            out_specs=(
                pl.BlockSpec((1, c_out_pad, t1), lambda b, t: (b, 0, t)),
                pl.BlockSpec((1, 1, c_out_pad, 1), lambda b, t: (b, t, 0, 0)),
                pl.BlockSpec((1, 1, c_out_pad, 1), lambda b, t: (b, t, 0, 0)),
            ),
        ),
        compiler_params=pltpu.CompilerParams(
            dimension_semantics=("parallel", "parallel"),
            vmem_limit_bytes=vmem_limit),
    )(patches_t, w2)

    # --- tiny per-channel epilogue in plain JAX (f32) ------------------------
    count = jnp.float32(n * hw)
    s = jnp.sum(psum[..., 0], axis=(0, 1))            # (c_out_pad,)
    sq = jnp.sum(psq[..., 0], axis=(0, 1))
    mean = s / count
    # Biased variance, as training-mode BatchNorm2d uses.  Clamp at 0 so f32
    # cancellation in E[y^2] - mean^2 can never reach sqrt as a negative.
    var = jnp.maximum(sq / count - mean * mean, 0.0)
    inv_std = 1.0 / jnp.sqrt(var + eps)
    g = jnp.pad(gamma.astype(jnp.float32), (0, c_out_pad - c_out),
                constant_values=1.0)
    b = jnp.pad(beta.astype(jnp.float32), (0, c_out_pad - c_out))
    scale = (g * inv_std)[:, None]                     # (c_out_pad, 1)
    shift = (b - mean * g * inv_std)[:, None]

    # --- pass 2: scale/shift + activation, written as (N, C, Ho*Wo) ----------
    def p2_bytes(t):
        return 2 * c_out_pad * t * (interm_bytes + out_bytes) + 4096

    t2 = t1
    for m in range(g1, 0, -1):                         # largest tile dividing hw_pad
        cand = t1 * m
        if g1 % m == 0 and cand <= 8192 and p2_bytes(cand) <= budget:
            t2 = cand
            break
    g2 = hw_pad // t2

    out_p = pl.pallas_call(
        functools.partial(_bn_act_kernel, act=act),
        out_shape=jax.ShapeDtypeStruct((n, c_out_pad, hw_pad), out_dtype),
        grid_spec=pltpu.PrefetchScalarGridSpec(
            num_scalar_prefetch=0,
            grid=(n, g2),
            in_specs=[
                pl.BlockSpec((1, c_out_pad, t2), lambda b, t: (b, 0, t)),
                pl.BlockSpec((c_out_pad, 1), lambda b, t: (0, 0)),
                pl.BlockSpec((c_out_pad, 1), lambda b, t: (0, 0)),
            ],
            out_specs=pl.BlockSpec((1, c_out_pad, t2), lambda b, t: (b, 0, t)),
        ),
        compiler_params=pltpu.CompilerParams(
            dimension_semantics=("parallel", "parallel"),
            vmem_limit_bytes=vmem_limit),
    )(y, scale, shift)

    # Usually a no-op slice + free reshape (no full NCHW transpose pass).
    return out_p[:, :c_out, :hw].reshape(n, c_out, h_out, w_out)


# ------------------------------ reference ----------------------------------


def _reference(x, weight, gamma, beta, *, stride, padding, act, eps=1e-5):
    y = jax.lax.conv_general_dilated(
        x, weight, (stride, stride),
        [(padding, padding), (padding, padding)],
        dimension_numbers=("NCHW", "OIHW", "NCHW"),
        precision=jax.lax.Precision.HIGHEST,
    )
    mean = y.mean(axis=(0, 2, 3), keepdims=True)
    var = y.var(axis=(0, 2, 3), keepdims=True)     # biased, like training-mode BN
    z = (y - mean) / jnp.sqrt(var + eps)
    z = z * gamma[None, :, None, None] + beta[None, :, None, None]
    if act in ("silu", "swish"):
        z = z * jax.nn.sigmoid(z)
    elif act == "relu":
        z = jnp.maximum(z, 0.0)
    elif act == "lrelu":
        z = jnp.where(z >= 0, z, 0.1 * z)
    elif act == "hardsigmoid":
        z = jnp.clip(z / 6.0 + 0.5, 0.0, 1.0)
    return z


# --------------------------------- main -------------------------------------


if __name__ == "__main__":
    key = jax.random.PRNGKey(0)

    # (ch_in, ch_out, filter_size, stride, padding, act) — small configs that
    # exercise the 3x3/1x1, strided, padded-channel and padded-HW code paths.
    configs = [
        (4, 8, 3, 1, 1, "silu"),
        (4, 16, 3, 2, 1, "relu"),
        (4, 12, 1, 1, 0, None),
    ]

    for idx, (ch_in, ch_out, fs, stride, padding, act) in enumerate(configs):
        key, k_x, k_w, k_g, k_b = jax.random.split(key, 5)
        x = jax.random.normal(k_x, (2, ch_in, 16, 16), dtype=jnp.float32)
        weight = 0.1 * jax.random.normal(k_w, (ch_out, ch_in, fs, fs),
                                         dtype=jnp.float32)
        gamma = 1.0 + 0.1 * jax.random.normal(k_g, (ch_out,), dtype=jnp.float32)
        beta = 0.1 * jax.random.normal(k_b, (ch_out,), dtype=jnp.float32)

        out = conv_bn_layer(x, weight, gamma, beta,
                            stride=stride, padding=padding, act=act)
        out = jax.block_until_ready(out)

        ref = _reference(x, weight, gamma, beta,
                         stride=stride, padding=padding, act=act)
        assert out.shape == ref.shape, (idx, out.shape, ref.shape)
        max_err = float(jnp.max(jnp.abs(out - ref)))
        # Tolerance accounts for bf16 MXU operands + the bf16 conv intermediate
        # vs the f32 HIGHEST-precision reference (BN stats are still f32).
        assert jnp.allclose(out, ref, atol=3e-2, rtol=3e-2), (idx, max_err)

    print("KERNEL_OK")
</pallas_src>

<mosaic_0001>
module attributes {stable_mosaic.version = 11 : i64} {
  func.func @_gemm_stats_kernel(%arg0: i32, %arg1: i32, %arg2: memref<1x48x256xbf16, #tpu.memory_space<vmem>>, %arg3: memref<16x48xbf16, #tpu.memory_space<vmem>>, %arg4: memref<1x16x256xbf16, #tpu.memory_space<vmem>>, %arg5: memref<1x1x16x1xf32, #tpu.memory_space<vmem>>, %arg6: memref<1x1x16x1xf32, #tpu.memory_space<vmem>>) attributes {dimension_semantics = [#tpu.dimension_semantics<parallel>, #tpu.dimension_semantics<parallel>], iteration_bounds = array<i64: 2, 1>, scalar_prefetch = 0 : i64, scratch_operands = 0 : i64, tpu.core_type = #tpu.core_type<tc>, window_params = [{transform_indices = @transform_0, window_bounds = array<i64: 1, 48, 256>}, {pipeline_mode = #tpu.pipeline_mode<synchronous>, transform_indices = @transform_1, window_bounds = array<i64: 16, 48>}, {transform_indices = @transform_2, window_bounds = array<i64: 1, 16, 256>}, {transform_indices = @transform_3, window_bounds = array<i64: 1, 1, 16, 1>}, {transform_indices = @transform_4, window_bounds = array<i64: 1, 1, 16, 1>}]} {
    %c0 = arith.constant 0 : index
    %c0_0 = arith.constant 0 : index
    %c0_1 = arith.constant 0 : index
    %0 = vector.load %arg2[%c0, %c0_0, %c0_1] : memref<1x48x256xbf16, #tpu.memory_space<vmem>>, vector<1x48x256xbf16>
    %1 = vector.shape_cast %0 : vector<1x48x256xbf16> to vector<48x256xbf16>
    %c0_2 = arith.constant 0 : index
    %c0_3 = arith.constant 0 : index
    %2 = vector.load %arg3[%c0_2, %c0_3] : memref<16x48xbf16, #tpu.memory_space<vmem>>, vector<16x48xbf16>
    %cst = arith.constant dense<0.000000e+00> : vector<16x256xf32>
    %3 = tpu.matmul %2, %1, %cst {dimension_numbers = #tpu.dot_dimension_numbers<[1], [0], [0], [1], [0, 0, 1, 1], [], []>} : vector<16x48xbf16>, vector<48x256xbf16>, vector<16x256xf32> -> vector<16x256xf32>
    %cst_4 = arith.constant dense<0.000000e+00> : vector<16xf32>
    %4 = vector.multi_reduction <add>, %3, %cst_4 [1] : vector<16x256xf32> to vector<16xf32>
    %5 = vector.shape_cast %4 : vector<16xf32> to vector<16x1xf32>
    %6 = vector.shape_cast %5 : vector<16x1xf32> to vector<1x1x16x1xf32>
    %c0_5 = arith.constant 0 : index
    %c0_6 = arith.constant 0 : index
    %c0_7 = arith.constant 0 : index
    %c0_8 = arith.constant 0 : index
    %7 = vector.load %arg5[%c0_5, %c0_6, %c0_7, %c0_8] : memref<1x1x16x1xf32, #tpu.memory_space<vmem>>, vector<1x1x16x1xf32>
    tpu.vector_store %arg5[%c0_5, %c0_6, %c0_7, %c0_8], %6 {strides = array<i32>} : memref<1x1x16x1xf32, #tpu.memory_space<vmem>>, vector<1x1x16x1xf32>,
    %8 = arith.mulf %3, %3 : vector<16x256xf32>
    %cst_9 = arith.constant dense<0.000000e+00> : vector<16xf32>
    %9 = vector.multi_reduction <add>, %8, %cst_9 [1] : vector<16x256xf32> to vector<16xf32>
    %10 = vector.shape_cast %9 : vector<16xf32> to vector<16x1xf32>
    %11 = vector.shape_cast %10 : vector<16x1xf32> to vector<1x1x16x1xf32>
    %c0_10 = arith.constant 0 : index
    %c0_11 = arith.constant 0 : index
    %c0_12 = arith.constant 0 : index
    %c0_13 = arith.constant 0 : index
    %12 = vector.load %arg6[%c0_10, %c0_11, %c0_12, %c0_13] : memref<1x1x16x1xf32, #tpu.memory_space<vmem>>, vector<1x1x16x1xf32>
    tpu.vector_store %arg6[%c0_10, %c0_11, %c0_12, %c0_13], %11 {strides = array<i32>} : memref<1x1x16x1xf32, #tpu.memory_space<vmem>>, vector<1x1x16x1xf32>,
    %13 = vector.shape_cast %3 : vector<16x256xf32> to vector<1x16x256xf32>
    %14 = arith.truncf %13 : vector<1x16x256xf32> to vector<1x16x256xbf16>
    %c0_14 = arith.constant 0 : index
    %c0_15 = arith.constant 0 : index
    %c0_16 = arith.constant 0 : index
    %15 = vector.load %arg4[%c0_14, %c0_15, %c0_16] : memref<1x16x256xbf16, #tpu.memory_space<vmem>>, vector<1x16x256xbf16>
    tpu.vector_store %arg4[%c0_14, %c0_15, %c0_16], %14 {strides = array<i32>} : memref<1x16x256xbf16, #tpu.memory_space<vmem>>, vector<1x16x256xbf16>,
    return
  }
  func.func @transform_0(%arg0: i32, %arg1: i32) -> (i32, i32, i32) {
    %c0_i32 = arith.constant 0 : i32
    %c0_i32_0 = arith.constant 0 : i32
    return %arg0, %c0_i32, %arg1 : i32, i32, i32
  }
  func.func @transform_1(%arg0: i32, %arg1: i32) -> (i32, i32) {
    %c0_i32 = arith.constant 0 : i32
    %c0_i32_0 = arith.constant 0 : i32
    %c0_i32_1 = arith.constant 0 : i32
    return %c0_i32, %c0_i32_0 : i32, i32
  }
  func.func @transform_2(%arg0: i32, %arg1: i32) -> (i32, i32, i32) {
    %c0_i32 = arith.constant 0 : i32
    %c0_i32_0 = arith.constant 0 : i32
    return %arg0, %c0_i32, %arg1 : i32, i32, i32
  }
  func.func @transform_3(%arg0: i32, %arg1: i32) -> (i32, i32, i32, i32) {
    %c0_i32 = arith.constant 0 : i32
    %c0_i32_0 = arith.constant 0 : i32
    %c0_i32_1 = arith.constant 0 : i32
    return %arg0, %arg1, %c0_i32, %c0_i32_0 : i32, i32, i32, i32
  }
  func.func @transform_4(%arg0: i32, %arg1: i32) -> (i32, i32, i32, i32) {
    %c0_i32 = arith.constant 0 : i32
    %c0_i32_0 = arith.constant 0 : i32
    %c0_i32_1 = arith.constant 0 : i32
    return %arg0, %arg1, %c0_i32, %c0_i32_0 : i32, i32, i32, i32
  }
}

</mosaic_0001>

<llo_original>
// kernel: tpu_custom_call.1
$region0: #{tpu_custom_call.1}
  #allocation0 [shape = 'u32[]', space=smem, size = 0x4, offset = 0x4, fixed_abs, tag = 'smem constant byte address 0x4 - core index']
  #allocation1 [shape = 'u32[72,128]{1,0:T(1,128)}', space=vmem, size = 0x9000, scoped, tag = 'internal scratch']
  %s0 = inlined_call_operand.hbm [shape: bf16[2,48,256], index: 0, kind: input, shape index: {}]
  %s1 = inlined_call_operand.hbm [shape: bf16[16,48], index: 1, kind: input, shape index: {}]
  %s2 = inlined_call_operand.hbm [shape: bf16[2,16,256], index: 2, kind: output, shape index: {0}]
  %s3 = inlined_call_operand.vmem [shape: f32[2,1,16,1], index: 3, kind: output, shape index: {1}]
  %s4 = inlined_call_operand.vmem [shape: f32[2,1,16,1], index: 4, kind: output, shape index: {2}]
  %5 = xla_tuple %s2, %s3, %s4
  %s6 = sld [smem:[#allocation0]]
  $region65: #{tpu_custom_call.1} parent=0
    _
  %s8 = ssub.s32 1, %s6
  %s9 = scalar_select 0, %s8, %s6
  $region1: #{tpu_custom_call.1} parent=0
    #allocation2 [shape = 'u8[49152]{0}', space=vmem, size = 0xc000, scoped, tag = 'input window, operand 0']
    #allocation3 [shape = 's32[2]{0}', space=sflag, size = 0x8, scoped, tag = 'scoped memory for tpu_custom_call.1']
    #allocation4 [shape = 's32[2]{0}', space=sflag, size = 0x8, scoped, tag = 'scoped memory for tpu_custom_call.1']
    #allocation5 [shape = 'u8[4096]{0}', space=vmem, size = 0x1000, scoped, tag = 'input window, operand 1, single buffered']
    #allocation6 [shape = 's32[1]{0}', space=sflag, size = 0x4, scoped, tag = 'scoped memory for tpu_custom_call.1']
    #allocation7 [shape = 'u8[16384]{0}', space=vmem, size = 0x4000, scoped, tag = 'output window, operand 0']
    %10 = vsyncpa [#allocation3], 0
    %s11 = scalar_lea.sflag [#allocation3], 1
    %12 = vsyncpa %s11, 0
    %13 = vsyncpa [#allocation6], 0
    %14 = vsyncpa [#allocation4], 0
    %s15 = scalar_lea.sflag [#allocation4], 1
    %16 = vsyncpa %s15, 0
    loop: start=0, step=1, limit=4
    $region2: #{tpu_custom_call.1} parent=1 // loop_pre_header
      _
    $region3: #{tpu_custom_call.1} parent=1 // loop_header
      %s18 = sphi 0, %s22
      %p19 = scmp.ge.s32.totalorder %s18, 4
      %s25 = sphi 0, %s37
      %s26 = sphi 0, %s33
      %s27 = sphi 0, %s25
      %s28 = sphi 0, %s26
      %s29 = sphi 0, %s27
      %s30 = sphi 0, %s28
      %s42 = sphi 0, %s44
      %s45 = sphi 0, %s42
      %s46 = sphi 0, %s45
      %s62 = sphi 0, %s46
      %s66 = sphi 0, %s66
      %s68 = sphi 0, %s66
      %s69 = sphi 0, %s68
      %s83 = sphi 0, %s69
      %s91 = sphi 0, %s93
      %s94 = sphi 0, %s91
      %s95 = sphi 0, %s94
      %s111 = sphi 0, %s95
      %s119 = sphi 0, %s121
      %s122 = sphi 0, %s119
      %s123 = sphi 0, %s122
      %s139 = sphi 0, %s123
      %s147 = sphi 0, %s149
      %s150 = sphi 0, %s147
      %s151 = sphi 0, %s150
      %s167 = sphi 0, %s151
    $region4: #{tpu_custom_call.1} parent=1 // loop_header_branch
      %21 = sbr.rel (%p19) target = $region8
    $region5: #{tpu_custom_call.1} parent=1 // loop_body
      %s23 = ssub.s32 %s18, 1
      %s24 = ssub.s32 %s18, 2
      %s31 = sadd.s32 1, %s26
      %p32 = scmp.ge.s32.totalorder %s31, 1
      %s33 = scalar_select %p32, 0, %s31
      %s34 = sadd.s32 1, %s25
      %s35 = scalar_select %p32, %s34, %s25
      %p36 = scmp.ge.s32.totalorder %s35, 2
      %s37 = scalar_select %p36, 0, %s35
      %s38 = ssub.s32 %s25, %s37
      %s39 = ssub.s32 %s26, %s33
      %s40 = sor.u32 %s38, %s39
      %p41 = scmp.eq.s32.totalorder %s40, 0
      %s43 = sadd.s32 %s42, 1
      %s44 = scalar_select %p41, %s42, %s43
      %p47 = pneg %p41
      %p48 = scmp.eq.s32.totalorder %s18, 1
      %p49 = por %p47, %p48
      %p50 = scmp.ne.s32.totalorder %s42, %s45
      %p51 = scmp.eq.s32.totalorder %s18, 0
      %p52 = por %p50, %p51
      %p53 = scmp.ne.s32.totalorder %s42, %s45
      %p54 = scmp.eq.s32.totalorder %s23, 1
      %p55 = por %p53, %p54
      %p56 = scmp.ne.s32.totalorder %s45, %s46
      %p57 = scmp.eq.s32.totalorder %s23, 0
      %p58 = por %p56, %p57
      %p59 = scmp.ne.s32.totalorder %s45, %s46
      %p60 = scmp.eq.s32.totalorder %s24, 1
      %p61 = por %p59, %p60
      %p63 = scmp.ne.s32.totalorder %s46, %s62
      %p64 = scmp.eq.s32.totalorder %s24, 0
      %p65 = por %p63, %p64
      %s67 = sadd.s32 %s66, 1
      %p70 = scmp.eq.s32.totalorder %s18, 1
      %p71 = scmp.ne.s32.totalorder %s66, %s68
      %p72 = scmp.eq.s32.totalorder %s18, 0
      %p73 = por %p71, %p72
      %p74 = scmp.ne.s32.totalorder %s66, %s68
      %p75 = scmp.eq.s32.totalorder %s23, 1
      %p76 = por %p74, %p75
      %p77 = scmp.ne.s32.totalorder %s68, %s69
      %p78 = scmp.eq.s32.totalorder %s23, 0
      %p79 = por %p77, %p78
      %p80 = scmp.ne.s32.totalorder %s68, %s69
      %p81 = scmp.eq.s32.totalorder %s24, 1
      %p82 = por %p80, %p81
      %p84 = scmp.ne.s32.totalorder %s69, %s83
      %p85 = scmp.eq.s32.totalorder %s24, 0
      %p86 = por %p84, %p85
      %s87 = ssub.s32 %s25, %s37
      %s88 = ssub.s32 %s26, %s33
      %s89 = sor.u32 %s87, %s88
      %p90 = scmp.eq.s32.totalorder %s89, 0
      %s92 = sadd.s32 %s91, 1
      %s93 = scalar_select %p90, %s91, %s92
      %p96 = pneg %p90
      %p97 = scmp.eq.s32.totalorder %s18, 1
      %p98 = por %p96, %p97
      %p99 = scmp.ne.s32.totalorder %s91, %s94
      %p100 = scmp.eq.s32.totalorder %s18, 0
      %p101 = por %p99, %p100
      %p102 = scmp.ne.s32.totalorder %s91, %s94
      %p103 = scmp.eq.s32.totalorder %s23, 1
      %p104 = por %p102, %p103
      %p105 = scmp.ne.s32.totalorder %s94, %s95
      %p106 = scmp.eq.s32.totalorder %s23, 0
      %p107 = por %p105, %p106
      %p108 = scmp.ne.s32.totalorder %s94, %s95
      %p109 = scmp.eq.s32.totalorder %s24, 1
      %p110 = por %p108, %p109
      %p112 = scmp.ne.s32.totalorder %s95, %s111
      %p113 = scmp.eq.s32.totalorder %s24, 0
      %p114 = por %p112, %p113
      %s115 = ssub.s32 %s25, %s37
      %s116 = ssub.s32 %s26, %s33
      %s117 = sor.u32 %s115, %s116
      %p118 = scmp.eq.s32.totalorder %s117, 0
      %s120 = sadd.s32 %s119, 1
      %s121 = scalar_select %p118, %s119, %s120
      %p124 = pneg %p118
      %p125 = scmp.eq.s32.totalorder %s18, 1
      %p126 = por %p124, %p125
      %p127 = scmp.ne.s32.totalorder %s119, %s122
      %p128 = scmp.eq.s32.totalorder %s18, 0
      %p129 = por %p127, %p128
      %p130 = scmp.ne.s32.totalorder %s119, %s122
      %p131 = scmp.eq.s32.totalorder %s23, 1
      %p132 = por %p130, %p131
      %p133 = scmp.ne.s32.totalorder %s122, %s123
      %p134 = scmp.eq.s32.totalorder %s23, 0
      %p135 = por %p133, %p134
      %p136 = scmp.ne.s32.totalorder %s122, %s123
      %p137 = scmp.eq.s32.totalorder %s24, 1
      %p138 = por %p136, %p137
      %p140 = scmp.ne.s32.totalorder %s123, %s139
      %p141 = scmp.eq.s32.totalorder %s24, 0
      %p142 = por %p140, %p141
      %s143 = ssub.s32 %s25, %s37
      %s144 = ssub.s32 %s26, %s33
      %s145 = sor.u32 %s143, %s144
      %p146 = scmp.eq.s32.totalorder %s145, 0
      %s148 = sadd.s32 %s147, 1
      %s149 = scalar_select %p146, %s147, %s148
      %p152 = pneg %p146
      %p153 = scmp.eq.s32.totalorder %s18, 1
      %p154 = por %p152, %p153
      %p155 = scmp.ne.s32.totalorder %s147, %s150
      %p156 = scmp.eq.s32.totalorder %s18, 0
      %p157 = por %p155, %p156
      %p158 = scmp.ne.s32.totalorder %s147, %s150
      %p159 = scmp.eq.s32.totalorder %s23, 1
      %p160 = por %p158, %p159
      %p161 = scmp.ne.s32.totalorder %s150, %s151
      %p162 = scmp.eq.s32.totalorder %s23, 0
      %p163 = por %p161, %p162
      %p164 = scmp.ne.s32.totalorder %s150, %s151
      %p165 = scmp.eq.s32.totalorder %s24, 1
      %p166 = por %p164, %p165
      %p168 = scmp.ne.s32.totalorder %s151, %s167
      %p169 = scmp.eq.s32.totalorder %s24, 0
      %p170 = por %p168, %p169
      %p171 = scmp.le.s32.totalorder 1, %s18
      %p172 = scmp.lt.s32.totalorder %s18, 3
      %p173 = pnand %p171, %p172
      %p174 = pneg %p173
      // Predicated region
      $region9: #{tpu_custom_call.1} parent=5 // pred_check
        _
      $region10: #{tpu_custom_call.1} parent=5 // pred_check_branch
        %176 = sbr.rel (%p173) target = $region12
      $region11: #{tpu_custom_call.1} parent=5 // pred_region
        %s177 = ssub.s32 %s18, 1
        // Predicated region
        $region13: #{tpu_custom_call.1} parent=11 // pred_check
          %p178 = pneg %p79
        $region14: #{tpu_custom_call.1} parent=11 // pred_check_branch
          %180 = sbr.rel (%p178) target = $region16
        $region15: #{tpu_custom_call.1} parent=11 // pred_region
          %182 = vsyncadd [#allocation6], 0
          %s183 = sshll.u32 %s1, 4
          %s184 = int_to_ptr.hbm [resolvable:$true] %s183
          %s185 = sshll.u32 [#allocation5], 4
          %s186 = int_to_ptr.vmem [resolvable:$true] %s185
          %191 = dma.hbm_to_vmem [thread:$0]  %s184, 128, %s186, [#allocation6], 64, 64, 4
        $region16: #{tpu_custom_call.1} parent=11 // pred_fallthru
          _
      $region12: #{tpu_custom_call.1} parent=5 // pred_fallthru
        _
      %p192 = scmp.lt.s32.totalorder %s18, 2
      // Predicated region
      $region17: #{tpu_custom_call.1} parent=5 // pred_check
        %p193 = pneg %p192
      $region18: #{tpu_custom_call.1} parent=5 // pred_check_branch
        %195 = sbr.rel (%p193) target = $region20
      $region19: #{tpu_custom_call.1} parent=5 // pred_region
        // Predicated region
        $region21: #{tpu_custom_call.1} parent=19 // pred_check
          %p196 = pneg %p52
        $region22: #{tpu_custom_call.1} parent=19 // pred_check_branch
          %198 = sbr.rel (%p196) target = $region24
        $region23: #{tpu_custom_call.1} parent=19 // pred_region
          %s199 = sand.u32 %s42, 1
          %s200 = scalar_lea.sflag [#allocation3], %s199
          %s201 = sand.u32 %s42, 1
          %s202 = smul.addr %s201, 48
          %s203 = scalar_lea.vmem [#allocation2], %s202
          %s204 = smul.u32 2, %s26
          %206 = vsyncadd %s200, 0
          %s207 = smul.addr %s25, 12
          %s208 = sadd.s32 %s204, %s207
          %s209 = smul.addr %s208, 4
          %s210 = scalar_lea.hbm %s0, %s209
          %s211 = sshll.u32 %s210, 4
          %s212 = int_to_ptr.hbm [resolvable:$true] %s211
          %s213 = sshll.u32 %s203, 4
          %s214 = int_to_ptr.vmem [resolvable:$true] %s213
          %219 = dma.hbm_to_vmem [thread:$0]  %s212, 768, %s214, %s200, 128, 128, 8
        $region24: #{tpu_custom_call.1} parent=19 // pred_fallthru
          _
      $region20: #{tpu_custom_call.1} parent=5 // pred_fallthru
        _
      %p220 = scmp.le.s32.totalorder 1, %s18
      %p221 = scmp.lt.s32.totalorder %s18, 3
      %p222 = pnand %p220, %p221
      %p223 = pneg %p222
      // Predicated region
      $region25: #{tpu_custom_call.1} parent=5 // pred_check
        _
      $region26: #{tpu_custom_call.1} parent=5 // pred_check_branch
        %225 = sbr.rel (%p222) target = $region28
      $region27: #{tpu_custom_call.1} parent=5 // pred_region
        %s226 = ssub.s32 %s18, 1
        %s227 = sand.u32 %s45, 1
        %s228 = scalar_lea.sflag [#allocation3], %s227
        %s229 = sand.u32 %s45, 1
        %s230 = smul.addr %s229, 48
        %s231 = scalar_lea.vmem [#allocation2], %s230
        // Predicated region
        $region29: #{tpu_custom_call.1} parent=27 // pred_check
          %p232 = pneg %p58
        $region30: #{tpu_custom_call.1} parent=27 // pred_check_branch
          %234 = sbr.rel (%p232) target = $region32
        $region31: #{tpu_custom_call.1} parent=27 // pred_region
          %236 = dma.done %s228, 768
        $region32: #{tpu_custom_call.1} parent=27 // pred_fallthru
          _
        // Predicated region
        $region33: #{tpu_custom_call.1} parent=27 // pred_check
          %p237 = pneg %p79
        $region34: #{tpu_custom_call.1} parent=27 // pred_check_branch
          %239 = sbr.rel (%p237) target = $region36
        $region35: #{tpu_custom_call.1} parent=27 // pred_region
          %241 = dma.done [#allocation6], 128
        $region36: #{tpu_custom_call.1} parent=27 // pred_fallthru
          _
        %s242 = sand.u32 %s45, 1
        %s243 = scalar_lea.sflag [#allocation3], %s242
        %s244 = sand.u32 %s45, 1
        %s245 = smul.addr %s244, 48
        %s246 = scalar_lea.vmem [#allocation2], %s245
        %p247 = pneg %p58
        %p248 = pneg %p55
        %p249 = pneg %p79
        %p250 = pneg %p76
        %p251 = pneg %p107
        %p252 = pneg %p104
        %s253 = sand.u32 %s94, 1
        %s254 = scalar_lea.sflag [#allocation4], %s253
        %s255 = sand.u32 %s94, 1
        %s256 = smul.addr %s255, 16
        %s257 = scalar_lea.vmem [#allocation7], %s256
        %p258 = pneg %p135
        %p259 = pneg %p132
        %p260 = scmp.lt.s32.totalorder %s27, 1
        %s261 = scalar_select %p260, %s27, 1
        %p262 = scmp.lt.s32.totalorder %s28, 0
        %s263 = scalar_select %p262, %s28, 0
        %s264 = smul.addr %s263, 2
        %s265 = smul.addr %s261, 2
        %s266 = sadd.s32 %s264, %s265
        %s267 = smul.addr %s266, 8
        %s268 = scalar_lea.vmem %s3, %s267
        %p269 = pneg %p163
        %p270 = pneg %p160
        %p271 = scmp.lt.s32.totalorder %s27, 1
        %s272 = scalar_select %p271, %s27, 1
        %p273 = scmp.lt.s32.totalorder %s28, 0
        %s274 = scalar_select %p273, %s28, 0
        %s275 = smul.addr %s274, 2
        %s276 = smul.addr %s272, 2
        %s277 = sadd.s32 %s275, %s276
        %s278 = smul.addr %s277, 8
        %s279 = scalar_lea.vmem %s4, %s278
        %s280 = smul.u32 2, %s28
        %s281 = smul.u32 2, %s28
        %p282 = scmp.lt.s32.totalorder %s27, 1
        %s283 = scalar_select %p282, %s27, 1
        %p284 = scmp.lt.s32.totalorder %s28, 0
        %s285 = scalar_select %p284, %s28, 0
        %s286 = smul.addr %s285, 2
        %s287 = smul.addr %s283, 2
        %s288 = sadd.s32 %s286, %s287
        %s289 = smul.addr %s288, 8
        %s290 = scalar_lea.vmem %s3, %s289
        %p291 = scmp.lt.s32.totalorder %s27, 1
        %s292 = scalar_select %p291, %s27, 1
        %p293 = scmp.lt.s32.totalorder %s28, 0
        %s294 = scalar_select %p293, %s28, 0
        %s295 = smul.addr %s294, 2
        %s296 = smul.addr %s292, 2
        %s297 = sadd.s32 %s295, %s296
        %s298 = smul.addr %s297, 8
        %s299 = scalar_lea.vmem %s4, %s298
        %v301 = vld [vmem:[%s231] sm:$0xff]
        %v302 = vld [vmem:[%s231 + $0x8] sm:$0xff]
        %v303 = vld [vmem:[%s231 + $0x10] sm:$0xff]
        %v304 = vld [vmem:[%s231 + $0x18] sm:$0xff]
        %v305 = vld [vmem:[%s231 + $0x20] sm:$0xff]
        %v306 = vld [vmem:[%s231 + $0x28] sm:$0xff]
        %v307 = vld [vmem:[#allocation5] sm:$0xf]
        %v308 = vld [vmem:[#allocation5 + $0x4] sm:$0xf]
        %v311 = vunpack.c.l.b16 %v307
        %v312 = vunpack.c.l.b16 %v308
        %v313 = vpack.c.b16 %v312, %v311
        %v320 = vunpack.c.l.b16 %v301
        %v321 = vunpack.c.h.b16 %v301
        %v322 = vunpack.c.l.b16 %v302
        %v323 = vunpack.c.h.b16 %v302
        %v324 = vunpack.c.l.b16 %v303
        %v325 = vunpack.c.h.b16 %v303
        %v326 = vunpack.c.l.b16 %v304
        %v327 = vunpack.c.h.b16 %v304
        %v328 = vunpack.c.l.b16 %v305
        %v329 = vunpack.c.h.b16 %v305
        %v330 = vunpack.c.l.b16 %v306
        %v331 = vunpack.c.h.b16 %v306
        %v332 = vpack.c.b16 %v322, %v320
        %v333 = vpack.c.b16 %v323, %v321
        %v334 = vpack.c.b16 %v326, %v324
        %v335 = vpack.c.b16 %v327, %v325
        %v336 = vpack.c.b16 %v330, %v328
        %v337 = vpack.c.b16 %v331, %v329
        %vm344 = vcmask 392192
        %v346 = vsel %vm344, %v313, 0
        %348 = vmatpush.bf16.msra.mxu0 0
        %349 = vmatpush.bf16.msra.mxu0 0
        %350 = vmatpush.bf16.msra.mxu0 0
        %351 = vmatpush.bf16.msra.mxu0 0
        %352 = vmatpush.bf16.msra.mxu0 0
        %353 = vmatpush.bf16.msra.mxu0 %v336
        %354 = vmatpush.bf16.msra.mxu0 %v334
        %355 = vmatpush.bf16.msra.mxu0 %v332
        %356 = vmatmul.bf16.gmra.mxu0 %v346
        %v357 = vpop.f32.mrf.mxu0
        %v358 = vadd.f32 0.0, %v357
        %v359 = vpop.f32.mrf.mxu0
        %v360 = vadd.f32 0.0, %v359
        %361 = vdwg.mxu0
        %362 = vmatpush.bf16.msra.mxu0 0
        %363 = vmatpush.bf16.msra.mxu0 0
        %364 = vmatpush.bf16.msra.mxu0 0
        %365 = vmatpush.bf16.msra.mxu0 0
        %366 = vmatpush.bf16.msra.mxu0 0
        %367 = vmatpush.bf16.msra.mxu0 %v337
        %368 = vmatpush.bf16.msra.mxu0 %v335
        %369 = vmatpush.bf16.msra.mxu0 %v333
        %370 = vmatmul.bf16.gmra.mxu0 %v346
        %v371 = vpop.f32.mrf.mxu0
        %v372 = vadd.f32 0.0, %v371
        %v373 = vpop.f32.mrf.mxu0
        %v374 = vadd.f32 0.0, %v373
        %375 = vdwg.mxu0
        %v376 = vadd.f32 %v358, %v372
        %377 = vadd.xlane.f32.xlu0 %v376
        %v378 = vpop.xlane.xlu0 %377
        %v379 = vadd.f32 %v360, %v374
        %380 = vadd.xlane.f32.xlu0 %v379
        %v381 = vpop.xlane.xlu0 %380
        %vm382 = vcmask 7168
        %383 = vst.msk [vmem:[%s290] sm:$0xff] %vm382, %v378
        %384 = vst.msk [vmem:[%s290 + $0x8] sm:$0xff] %vm382, %v381
        %v385 = vmul.f32 %v358, %v358
        %v386 = vmul.f32 %v372, %v372
        %v387 = vmul.f32 %v360, %v360
        %v388 = vmul.f32 %v374, %v374
        %v389 = vadd.f32 %v385, %v386
        %390 = vadd.xlane.f32.xlu0 %v389
        %v391 = vpop.xlane.xlu0 %390
        %v392 = vadd.f32 %v387, %v388
        %393 = vadd.xlane.f32.xlu0 %v392
        %v394 = vpop.xlane.xlu0 %393
        %395 = vst.msk [vmem:[%s299] sm:$0xff] %vm382, %v391
        %396 = vst.msk [vmem:[%s299 + $0x8] sm:$0xff] %vm382, %v394
        %v397 = vpack.c.bf16 %v372, %v358
        %v398 = vpack.c.bf16 %v374, %v360
        %399 = vst [vmem:[%s257] sm:$0xff] %v397
        %400 = vst [vmem:[%s257 + $0x8] sm:$0xff] %v398
        %s401 = sand.u32 %s94, 1
        %s402 = scalar_lea.sflag [#allocation4], %s401
        %s403 = sand.u32 %s94, 1
        %s404 = smul.addr %s403, 16
        %s405 = scalar_lea.vmem [#allocation7], %s404
        %p406 = scmp.lt.s32.totalorder %s27, 1
        %s407 = scalar_select %p406, %s27, 1
        %p408 = scmp.lt.s32.totalorder %s28, 0
        %s409 = scalar_select %p408, %s28, 0
        %s410 = smul.addr %s409, 2
        %s411 = smul.addr %s407, 2
        %s412 = sadd.s32 %s410, %s411
        %s413 = smul.addr %s412, 8
        %s414 = scalar_lea.vmem %s3, %s413
        %p415 = scmp.lt.s32.totalorder %s27, 1
        %s416 = scalar_select %p415, %s27, 1
        %p417 = scmp.lt.s32.totalorder %s28, 0
        %s418 = scalar_select %p417, %s28, 0
        %s419 = smul.addr %s418, 2
        %s420 = smul.addr %s416, 2
        %s421 = sadd.s32 %s419, %s420
        %s422 = smul.addr %s421, 8
        %s423 = scalar_lea.vmem %s4, %s422
        // Predicated region
        $region37: #{tpu_custom_call.1} parent=27 // pred_check
          %p424 = pneg %p104
        $region38: #{tpu_custom_call.1} parent=27 // pred_check_branch
          %426 = sbr.rel (%p424) target = $region40
        $region39: #{tpu_custom_call.1} parent=27 // pred_region
          %s427 = smul.u32 2, %s28
          %429 = vsyncadd %s402, 0
          %s430 = smul.addr %s27, 4
          %s431 = sadd.s32 %s427, %s430
          %s432 = smul.addr %s431, 4
          %s433 = scalar_lea.hbm %s2, %s432
          %s434 = sshll.u32 %s405, 4
          %s435 = int_to_ptr.vmem [resolvable:$true] %s434
          %s436 = sshll.u32 %s433, 4
          %s437 = int_to_ptr.hbm [resolvable:$true] %s436
          %442 = dma.vmem_to_hbm [thread:$0]  %s435, 256, %s437, %s402, 128, 128, 8
        $region40: #{tpu_custom_call.1} parent=27 // pred_fallthru
          _
        // Predicated region
        $region41: #{tpu_custom_call.1} parent=27 // pred_check
          %p443 = pneg %p132
        $region42: #{tpu_custom_call.1} parent=27 // pred_check_branch
          %445 = sbr.rel (%p443) target = $region44
        $region43: #{tpu_custom_call.1} parent=27 // pred_region
          _
        $region44: #{tpu_custom_call.1} parent=27 // pred_fallthru
          _
        // Predicated region
        $region45: #{tpu_custom_call.1} parent=27 // pred_check
          %p446 = pneg %p160
        $region46: #{tpu_custom_call.1} parent=27 // pred_check_branch
          %448 = sbr.rel (%p446) target = $region48
        $region47: #{tpu_custom_call.1} parent=27 // pred_region
          _
        $region48: #{tpu_custom_call.1} parent=27 // pred_fallthru
          _
      $region28: #{tpu_custom_call.1} parent=5 // pred_fallthru
        _
      %p449 = scmp.le.s32.totalorder 2, %s18
      // Predicated region
      $region49: #{tpu_custom_call.1} parent=5 // pred_check
        %p450 = pneg %p449
      $region50: #{tpu_custom_call.1} parent=5 // pred_check_branch
        %452 = sbr.rel (%p450) target = $region52
      $region51: #{tpu_custom_call.1} parent=5 // pred_region
        %s453 = ssub.s32 %s18, 2
        // Predicated region
        $region53: #{tpu_custom_call.1} parent=51 // pred_check
          %p454 = pneg %p110
        $region54: #{tpu_custom_call.1} parent=51 // pred_check_branch
          %456 = sbr.rel (%p454) target = $region56
        $region55: #{tpu_custom_call.1} parent=51 // pred_region
          %s457 = sand.u32 %s95, 1
          %s458 = scalar_lea.sflag [#allocation4], %s457
          %s459 = sand.u32 %s95, 1
          %s460 = smul.addr %s459, 16
          %s461 = scalar_lea.vmem [#allocation7], %s460
          %463 = dma.done %s458, 256
        $region56: #{tpu_custom_call.1} parent=51 // pred_fallthru
          _
        // Predicated region
        $region57: #{tpu_custom_call.1} parent=51 // pred_check
          %p464 = pneg %p138
        $region58: #{tpu_custom_call.1} parent=51 // pred_check_branch
          %466 = sbr.rel (%p464) target = $region60
        $region59: #{tpu_custom_call.1} parent=51 // pred_region
          %p467 = scmp.lt.s32.totalorder %s29, 1
          %s468 = scalar_select %p467, %s29, 1
          %p469 = scmp.lt.s32.totalorder %s30, 0
          %s470 = scalar_select %p469, %s30, 0
          %s471 = smul.addr %s470, 2
          %s472 = smul.addr %s468, 2
          %s473 = sadd.s32 %s471, %s472
          %s474 = smul.addr %s473, 8
          %s475 = scalar_lea.vmem %s3, %s474
        $region60: #{tpu_custom_call.1} parent=51 // pred_fallthru
          _
        // Predicated region
        $region61: #{tpu_custom_call.1} parent=51 // pred_check
          %p476 = pneg %p166
        $region62: #{tpu_custom_call.1} parent=51 // pred_check_branch
          %478 = sbr.rel (%p476) target = $region64
        $region63: #{tpu_custom_call.1} parent=51 // pred_region
          %p479 = scmp.lt.s32.totalorder %s29, 1
          %s480 = scalar_select %p479, %s29, 1
          %p481 = scmp.lt.s32.totalorder %s30, 0
          %s482 = scalar_select %p481, %s30, 0
          %s483 = smul.addr %s482, 2
          %s484 = smul.addr %s480, 2
          %s485 = sadd.s32 %s483, %s484
          %s486 = smul.addr %s485, 8
          %s487 = scalar_lea.vmem %s4, %s486
        $region64: #{tpu_custom_call.1} parent=51 // pred_fallthru
          _
      $region52: #{tpu_custom_call.1} parent=5 // pred_fallthru
        _
    $region6: #{tpu_custom_call.1} parent=1 // loop_footer
      %s22 = sadd.s32 1, %s18
    $region7: #{tpu_custom_call.1} parent=1 // loop_footer_branch
      %17 = sbr.rel target = $region3
    $region8: #{tpu_custom_call.1} parent=1 // loop_exit
      _
    %488 = vsyncpa [#allocation3], 1
    %s489 = scalar_lea.sflag [#allocation3], 1
    %490 = vsyncpa %s489, 1
    %491 = vsyncpa [#allocation6], 1
    %492 = vsyncpa [#allocation4], 1
    %s493 = scalar_lea.sflag [#allocation4], 1
    %494 = vsyncpa %s493, 1

</llo_original>
